<compile_context>
chip_gen: v5e
topology: v5e:2x2
jax: 0.10.0
libtpu: 0.0.40
codegen_flags: <defaults>
</compile_context>

<pallas_src>
import functools
import math

import jax
import jax.numpy as jnp
from jax.experimental import pallas as pl
from jax.experimental.pallas import tpu as pltpu

_LANE = 128
_TILE_BYTES = 4 * 1024 * 1024          # target bytes per pipelined buffer
_VMEM_LIMIT = 32 * 1024 * 1024         # 4 buffers x ~4 MiB << 32 MiB (safe on v7x too)
_MIN_PALLAS_ELEMS = 32 * 1024          # below this, fused XLA is cheaper than a launch

_ELEMENTWISE = ("relu", "tanh", "softplus", "sigmoid")
_ALL_NONLINEAR = _ELEMENTWISE + ("softmax",)


@functools.lru_cache(maxsize=1)
def _num_tensorcores() -> int:
    """TensorCores a single 'parallel' grid axis is split across (megacore)."""
    try:
        kind = jax.devices()[0].device_kind.lower()
    except Exception:
        return 1
    return 2 if ("v7" in kind or "v4" in kind or "v5p" in kind) else 1


def _sublanes(dtype) -> int:
    """Sublane packing of one (sub, 128) VMEM tile for this dtype (8/16/32)."""
    return max(8, 32 // jnp.dtype(dtype).itemsize)


def _pick_blocks(n_units: int, unit_bytes: int, num_tc: int) -> int:
    """Block size (in tiling units) for a 1-D HBM-streaming grid.

    Widest block that fits _TILE_BYTES per pipelined buffer while keeping >=3 grid
    steps per TensorCore (pipeline overlap) and, best effort, a step count that is
    a multiple of the TensorCore count (balanced megacore split).
    """
    if n_units <= 1:
        return 1
    by_budget = max(1, _TILE_BYTES // max(1, unit_bytes))
    min_steps = 3 * num_tc
    blk = min(by_budget, max(1, n_units // min_steps), n_units)
    if num_tc > 1 and blk > 1:
        grid = pl.cdiv(n_units, blk)
        if grid % num_tc:
            for cand in range(blk - 1, max(0, blk - 8), -1):
                if pl.cdiv(n_units, cand) % num_tc == 0:
                    blk = cand
                    break
    return blk


def _make_elementwise_kernel(non_linear: str, scale: float, value_clip):
    def kernel(x_ref, o_ref):
        x = x_ref[...]
        if non_linear == "relu":
            y = jnp.maximum(x, 0)                       # native dtype, pure VPU
        else:
            xf = x.astype(jnp.float32)
            if non_linear == "tanh":
                y = jnp.tanh(xf)
            elif non_linear == "sigmoid":
                y = 0.5 * jnp.tanh(0.5 * xf) + 0.5      # single EUP op, no overflow
            else:  # softplus = max(x,0) + log1p(exp(-|x|)): stable, one exp + one log1p
                y = jnp.maximum(xf, 0.0) + jnp.log1p(jnp.exp(-jnp.abs(xf)))
        if scale != 1.0:
            y = y * scale
        if value_clip is not None:
            y = jnp.minimum(y, value_clip)              # th.clamp_max
        o_ref[...] = y.astype(o_ref.dtype)
    return kernel


def _make_softmax_kernel(scale: float, value_clip):
    def kernel(x_ref, o_ref):
        # torch.softmax(inp, 0): reduce over the (untiled) leading axis of the block.
        x = x_ref[...].astype(jnp.float32)
        m = jnp.max(x, axis=0, keepdims=True)
        e = jnp.exp(x - m)
        d = jnp.sum(e, axis=0, keepdims=True)
        r = pl.reciprocal(d, approx=True)               # EUP slot
        r = r * (2.0 - d * r)                           # one Newton step -> ~f32 exact
        y = e * r
        if scale != 1.0:
            y = y * scale
        if value_clip is not None:
            y = jnp.minimum(y, value_clip)
        o_ref[...] = y.astype(o_ref.dtype)
    return kernel


def _stream_call(kernel, x, block_shape, index_map, grid):
    return pl.pallas_call(
        kernel,
        out_shape=jax.ShapeDtypeStruct(x.shape, x.dtype),
        grid_spec=pltpu.PrefetchScalarGridSpec(
            num_scalar_prefetch=0,
            grid=(grid,),
            in_specs=[pl.BlockSpec(block_shape, index_map)],
            out_specs=pl.BlockSpec(block_shape, index_map),
        ),
        compiler_params=pltpu.CompilerParams(
            dimension_semantics=("parallel",),
            vmem_limit_bytes=_VMEM_LIMIT,
        ),
    )(x)


def _jnp_forward(inp, non_linear, scale, value_clip):
    if non_linear == "relu":
        y = jax.nn.relu(inp)
    elif non_linear == "tanh":
        y = jnp.tanh(inp)
    elif non_linear == "sigmoid":
        y = jax.nn.sigmoid(inp)
    elif non_linear == "softplus":
        y = jax.nn.softplus(inp)
    else:
        y = jax.nn.softmax(inp, axis=0)
    y = y * scale
    if value_clip is not None:
        y = jnp.minimum(y, value_clip)
    return y


@functools.partial(jax.jit,
                   static_argnames=("non_linear", "scale", "value_clip", "force_pallas"))
def mask_non_linear(inp, *, non_linear: str = "sigmoid", scale: float = 1.0,
                    value_clip=None, force_pallas: bool = False):
    """JAX/Pallas equivalent of MaskNonLinear.forward."""
    if inp.ndim not in (3, 4):
        raise RuntimeError(f"MaskNonLinear expects 3/4D tensor, got {inp.ndim}")
    if non_linear not in _ALL_NONLINEAR:
        raise ValueError(f"Unsupported nonlinear: {non_linear}")
    # scale / value_clip are __init__-time constants of the torch module -> static here.
    scale = float(scale)
    value_clip = None if value_clip is None else float(value_clip)

    total = math.prod(inp.shape)
    if total < _MIN_PALLAS_ELEMS and not force_pallas:
        # Kernel launch overhead dominates for a few-KiB mask; let XLA fuse it.
        return _jnp_forward(inp, non_linear, scale, value_clip)

    num_tc = _num_tensorcores()
    itemsize = jnp.dtype(inp.dtype).itemsize
    sub = _sublanes(inp.dtype)
    s = inp.shape[0]
    rest = total // s

    if non_linear == "softmax":
        kernel = _make_softmax_kernel(scale, value_clip)
        if rest % _LANE == 0:
            # Lane-dense 3-D layout (S, P, Lm): dim-0 softmax reduces across S full
            # vregs, so small S (2-4 speakers) no longer under-fills sublanes.
            lm = next(w for w in (512, 256, _LANE) if rest % w == 0)
            p = rest // lm
            x3 = inp.reshape(s, p, lm)
            blk = _pick_blocks(pl.cdiv(p, sub), s * sub * lm * itemsize, num_tc)
            tile_p = min(p, blk * sub)          # multiple of 8, or equal to full P
            grid = pl.cdiv(p, tile_p)
            out = _stream_call(kernel, x3, (s, tile_p, lm), lambda j: (0, j, 0), grid)
            return out.reshape(inp.shape)
        # Awkward trailing size: fall back to the (S, rest) layout (dim-0 on sublanes);
        # correct (per-lane-independent reduction + masked partial lane block).
        return _legacy_2d(kernel, inp, s, rest, itemsize, sub, num_tc)

    kernel = _make_elementwise_kernel(non_linear, scale, value_clip)
    rows = next((r for r in (sub, 8) if total % (r * _LANE) == 0), None)
    if rows is not None:
        # Pure elementwise: row-major reshape is free, so stream the flat tensor as
        # (rows, lanes) with full sublane occupancy and lanes a multiple of 128.
        lanes = total // rows
        x2 = inp.reshape(rows, lanes)
        rows_pad = pl.cdiv(rows, sub) * sub
        blk = _pick_blocks(lanes // _LANE, rows_pad * _LANE * itemsize, num_tc)
        tile = min(lanes, blk * _LANE)
        grid = pl.cdiv(lanes, tile)
        out = _stream_call(kernel, x2, (rows, tile), lambda j: (0, j), grid)
        return out.reshape(inp.shape)
    # Awkward total: keep dim-0 as rows and tile the (possibly unaligned) lane dim.
    return _legacy_2d(kernel, inp, s, rest, itemsize, sub, num_tc)


def _legacy_2d(kernel, inp, rows, lanes, itemsize, sub, num_tc):
    x2 = inp.reshape(rows, lanes)
    if lanes <= _LANE:
        tile, grid = lanes, 1
    else:
        rows_pad = pl.cdiv(rows, sub) * sub
        blk = _pick_blocks(pl.cdiv(lanes, _LANE), rows_pad * _LANE * itemsize, num_tc)
        tile = blk * _LANE
        if tile >= lanes:
            tile = lanes            # full-extent block (no 128-divisibility needed)
        grid = pl.cdiv(lanes, tile)
    out = _stream_call(kernel, x2, (rows, tile), lambda j: (0, j), grid)
    return out.reshape(inp.shape)


if __name__ == "__main__":
    key = jax.random.PRNGKey(0)
    # (S) x N x F x T  — 2 speakers, batch 4, 16 freq bins, 16 frames
    x4 = jax.random.normal(key, (2, 4, 16, 16), dtype=jnp.float32)
    # 3D case: N x F x T
    x3 = jax.random.normal(jax.random.fold_in(key, 1), (4, 16, 8), dtype=jnp.float32)

    configs = [
        ("softmax", 1.0, None, x4),
        ("sigmoid", 2.0, 1.5, x4),
        ("relu", 1.0, 4.0, x3),
        ("softplus", 1.0, None, x3),
        ("tanh", 1.0, None, x4),
        ("softmax", 1.0, 0.4, x3),
    ]

    for nl, sc, vc, x in configs:
        # force_pallas=True so the small test shapes exercise the Pallas path
        # (real-sized masks go through it automatically).
        out = mask_non_linear(x, non_linear=nl, scale=sc, value_clip=vc,
                              force_pallas=True)
        jax.block_until_ready(out)
        ref = _jnp_forward(x, nl, sc, vc)
        assert out.shape == x.shape and out.dtype == x.dtype
        assert jnp.allclose(out, ref, atol=1e-5, rtol=1e-5), f"mismatch for {nl}"

    print("KERNEL_OK")
</pallas_src>

<mosaic_0001>
module attributes {stable_mosaic.version = 11 : i64} {
  func.func @kernel(%arg0: i32, %arg1: memref<2x2x512xf32, #tpu.memory_space<vmem>>, %arg2: memref<2x2x512xf32, #tpu.memory_space<vmem>>) attributes {dimension_semantics = [#tpu.dimension_semantics<parallel>], iteration_bounds = array<i64: 1>, scalar_prefetch = 0 : i64, scratch_operands = 0 : i64, tpu.core_type = #tpu.core_type<tc>, window_params = [{transform_indices = @transform_0, window_bounds = array<i64: 2, 2, 512>}, {transform_indices = @transform_1, window_bounds = array<i64: 2, 2, 512>}]} {
    %c0 = arith.constant 0 : index
    %c0_0 = arith.constant 0 : index
    %c0_1 = arith.constant 0 : index
    %0 = vector.load %arg1[%c0, %c0_0, %c0_1] : memref<2x2x512xf32, #tpu.memory_space<vmem>>, vector<2x2x512xf32>
    %cst = arith.constant dense<0xFF800000> : vector<2x512xf32>
    %1 = vector.multi_reduction <maximumf>, %0, %cst [0] : vector<2x2x512xf32> to vector<2x512xf32>
    %2 = vector.shape_cast %1 : vector<2x512xf32> to vector<1x2x512xf32>
    %3 = vector.broadcast %2 : vector<1x2x512xf32> to vector<2x2x512xf32>
    %4 = arith.subf %0, %3 : vector<2x2x512xf32>
    %5 = math.exp %4 : vector<2x2x512xf32>
    %cst_2 = arith.constant dense<0.000000e+00> : vector<2x512xf32>
    %6 = vector.multi_reduction <add>, %5, %cst_2 [0] : vector<2x2x512xf32> to vector<2x512xf32>
    %7 = vector.shape_cast %6 : vector<2x512xf32> to vector<1x2x512xf32>
    %8 = tpu.reciprocal %7 {approx = true} : vector<1x2x512xf32> -> vector<1x2x512xf32>
    %9 = arith.mulf %7, %8 : vector<1x2x512xf32>
    %cst_3 = arith.constant 2.000000e+00 : f32
    %10 = vector.broadcast %cst_3 : f32 to vector<1x2x512xf32>
    %11 = arith.subf %10, %9 : vector<1x2x512xf32>
    %12 = arith.mulf %8, %11 : vector<1x2x512xf32>
    %13 = vector.broadcast %12 : vector<1x2x512xf32> to vector<2x2x512xf32>
    %14 = arith.mulf %5, %13 : vector<2x2x512xf32>
    %c0_4 = arith.constant 0 : index
    %c0_5 = arith.constant 0 : index
    %c0_6 = arith.constant 0 : index
    %15 = vector.load %arg2[%c0_4, %c0_5, %c0_6] : memref<2x2x512xf32, #tpu.memory_space<vmem>>, vector<2x2x512xf32>
    tpu.vector_store %arg2[%c0_4, %c0_5, %c0_6], %14 {strides = array<i32>} : memref<2x2x512xf32, #tpu.memory_space<vmem>>, vector<2x2x512xf32>,
    return
  }
  func.func @transform_0(%arg0: i32) -> (i32, i32, i32) {
    %c0_i32 = arith.constant 0 : i32
    %c0_i32_0 = arith.constant 0 : i32
    %c0_i32_1 = arith.constant 0 : i32
    return %c0_i32, %arg0, %c0_i32_0 : i32, i32, i32
  }
  func.func @transform_1(%arg0: i32) -> (i32, i32, i32) {
    %c0_i32 = arith.constant 0 : i32
    %c0_i32_0 = arith.constant 0 : i32
    %c0_i32_1 = arith.constant 0 : i32
    return %c0_i32, %arg0, %c0_i32_0 : i32, i32, i32
  }
}

</mosaic_0001>

<llo_original>
// kernel: mask_non_linear.1
$region0: #{mask_non_linear.1}
  #allocation0 [shape = 'u32[]', space=smem, size = 0x4, offset = 0x4, fixed_abs, tag = 'smem constant byte address 0x4 - core index']
  #allocation1 [shape = 'u32[72,128]{1,0:T(1,128)}', space=vmem, size = 0x9000, scoped, tag = 'internal scratch']
  %s0 = inlined_call_operand.vmem [shape: f32[2,2,512], index: 0, kind: input, shape index: {}]
  %s1 = inlined_call_operand.vmem [shape: f32[2,2,512], index: 1, kind: output, shape index: {}]
  %s2 = sld [smem:[#allocation0]]
  $region14: #{mask_non_linear.1} parent=0
    _
  %s4 = ssub.s32 1, %s2
  %s5 = scalar_select 0, %s4, %s2
  // Predicated region
  $region2: #{mask_non_linear.1} parent=0 // pred_check
    _
  $region3: #{mask_non_linear.1} parent=0 // pred_check_branch
    %7 = sbr.rel (0) target = $region5
  $region4: #{mask_non_linear.1} parent=0 // pred_region
    _
  $region5: #{mask_non_linear.1} parent=0 // pred_fallthru
    _
  %v8 = vld [vmem:[%s0] sm:$0xff]
  %v9 = vld [vmem:[%s0 + $0x8] sm:$0xff]
  %v10 = vmax.f32 %v8, %v9
  %v11 = vsub.f32 %v8, %v10
  %v12 = vsub.f32 %v9, %v10
  %v13 = vmul.f32 %v11, 1.442695
  %v14 = vpow.pop %v13
  %v15 = vmul.f32 %v12, 1.442695
  %v16 = vpow.pop %v15
  %19 = vst [vmem:[#allocation1] ss:$4 sm:$0xff] %v14
  %v20 = vld.sshfl [vmem:[#allocation1] sm:$0xff pattern:$0x73625140]
  %v21 = vld.sshfl [vmem:[#allocation1 + $0x8] sm:$0xff pattern:$0x73625140]
  %v22 = vld.sshfl [vmem:[#allocation1 + $0x10] sm:$0xff pattern:$0x73625140]
  %v23 = vld.sshfl [vmem:[#allocation1 + $0x18] sm:$0xff pattern:$0x73625140]
  %s24 = scalar_lea.vmem [#allocation1], 32
  %25 = vst [vmem:[%s24] ss:$4 sm:$0xff] %v16
  %v26 = vld.sshfl [vmem:[#allocation1 + $0x20] sm:$0xff pattern:$0x73625140]
  %v27 = vld.sshfl [vmem:[#allocation1 + $0x28] sm:$0xff pattern:$0x73625140]
  %v28 = vld.sshfl [vmem:[#allocation1 + $0x30] sm:$0xff pattern:$0x73625140]
  %v29 = vld.sshfl [vmem:[#allocation1 + $0x38] sm:$0xff pattern:$0x73625140]
  %vm38 = vcmask 1041408
  %v39 = vsel %vm38, %v20, 0.0
  %v40 = vsel %vm38, %v26, 0.0
  %v41 = vadd.f32 %v39, %v40
  %v42 = vsel %vm38, %v21, 0.0
  %v43 = vsel %vm38, %v27, 0.0
  %v44 = vadd.f32 %v42, %v43
  %v45 = vsel %vm38, %v22, 0.0
  %v46 = vsel %vm38, %v28, 0.0
  %v47 = vadd.f32 %v45, %v46
  %v48 = vsel %vm38, %v23, 0.0
  %v49 = vsel %vm38, %v29, 0.0
  %v50 = vadd.f32 %v48, %v49
  %v51 = vrcp.pop %v41
  %v52 = vrcp.pop %v44
  %v53 = vrcp.pop %v47
  %v54 = vrcp.pop %v50
  %v55 = vmul.f32 %v41, %v51
  %v56 = vmul.f32 %v44, %v52
  %v57 = vmul.f32 %v47, %v53
  %v58 = vmul.f32 %v50, %v54
  %v59 = vsub.f32 2.0, %v55
  %v60 = vsub.f32 2.0, %v56
  %v61 = vsub.f32 2.0, %v57
  %v62 = vsub.f32 2.0, %v58
  %v63 = vmul.f32 %v51, %v59
  %v64 = vmul.f32 %v52, %v60
  %v65 = vmul.f32 %v53, %v61
  %v66 = vmul.f32 %v54, %v62
  %v71 = vrot.slane %v64, 6
  %v72 = vrot.slane %v65, 4
  %v73 = vrot.slane %v66, 2
  %v74 = vsel %vm38, %v63, %v71
  %vm75 = vcmask 1045508
  %v76 = vsel %vm75, %v72, %v73
  %vm77 = vcmask 1043456
  %v78 = vsel %vm77, %v74, %v76
  %v80 = vmul.f32 %v14, %v78
  %v81 = vmul.f32 %v16, %v78
  %82 = vst [vmem:[%s1] sm:$0xff] %v80
  %83 = vst [vmem:[%s1 + $0x8] sm:$0xff] %v81
  // Predicated region
  $region6: #{mask_non_linear.1} parent=0 // pred_check
    _
  $region7: #{mask_non_linear.1} parent=0 // pred_check_branch
    %85 = sbr.rel (0) target = $region9
  $region8: #{mask_non_linear.1} parent=0 // pred_region
    _
  $region9: #{mask_non_linear.1} parent=0 // pred_fallthru
    _
  // Predicated region
  $region10: #{mask_non_linear.1} parent=0 // pred_check
    _
  $region11: #{mask_non_linear.1} parent=0 // pred_check_branch
    %87 = sbr.rel (0) target = $region13
  $region12: #{mask_non_linear.1} parent=0 // pred_region
    _
  $region13: #{mask_non_linear.1} parent=0 // pred_fallthru
    _

</llo_original>
